<compile_context>
chip_gen: v7x
topology: tpu7x:2x2x1
jax: 0.10.0
libtpu: 0.0.40
codegen_flags: <defaults>
</compile_context>

<pallas_src>
import functools

import jax
import jax.numpy as jnp
import numpy as np
from jax.experimental import pallas as pl
from jax.experimental.pallas import tpu as pltpu


def _round_up(x, m):
    return (x + m - 1) // m * m


def _padded_batch(B):
    Bp = _round_up(B, 8)
    if Bp > 256:                      # multiple 256-row blocks for large batches
        Bp = _round_up(B, 256)
    return Bp


# ----------------------------- Pallas kernel --------------------------------

def dilated_lstm_cell_kernel(tick_ref, x_ref, state_ref,
                             w1t_ref, b1_ref, wih_ref, whh_ref, bg_ref,
                             w2_ref, b2_ref,
                             q_ref, state_out_ref):
    # tick is consumed by the index_maps (slot selection), not by the body.
    del tick_ref
    f32 = jnp.float32
    H = wih_ref.shape[0]

    x = x_ref[...]                       # (TB, D)
    state = state_ref[...]               # (TB, 2H) = [h | c] on lanes
    h = state[:, :H]
    c = state[:, H:]

    # fc1 + bias + ReLU
    z = jnp.maximum(
        jnp.dot(x, w1t_ref[...], preferred_element_type=f32) + b1_ref[...], 0.0)

    # All four LSTM gates: two matmuls summed (no lane concat at 2H offset).
    gates = (jnp.dot(z, wih_ref[...], preferred_element_type=f32)
             + jnp.dot(h, whh_ref[...], preferred_element_type=f32)
             + bg_ref[...])                                    # (TB, 4H)

    # One full-width sigmoid + one full-width tanh, then slice (PyTorch order
    # i, f, g, o).
    sig = jax.nn.sigmoid(gates)
    tnh = jnp.tanh(gates)
    i_gate = sig[:, 0 * H:1 * H]
    f_gate = sig[:, 1 * H:2 * H]
    g_gate = tnh[:, 2 * H:3 * H]
    o_gate = sig[:, 3 * H:4 * H]

    c_new = f_gate * c + i_gate * g_gate
    h_new = o_gate * jnp.tanh(c_new)

    # fc2 into a lane-dense padded (TB, OP) block (unmasked vector stores).
    q = jnp.dot(h_new, w2_ref[...], preferred_element_type=f32) + b2_ref[...]

    q_ref[...] = q
    state_out_ref[...] = jnp.concatenate([h_new, c_new], axis=-1)


# ------------------------ one-time parameter packing -------------------------

def pack_params(params):
    """Hoisted out of the step: transposes / bias merge / lane padding done once."""
    H = params["w_hh"].shape[1]
    O = params["w2"].shape[0]
    OP = _round_up(max(O, 128), 128)

    w1t = jnp.asarray(params["w1"].T, jnp.float32)                     # (D, H)
    b1 = params["b1"].reshape(1, H).astype(jnp.float32)                # (1, H)
    wih_t = jnp.asarray(params["w_ih"].T, jnp.float32)                 # (H, 4H)
    whh_t = jnp.asarray(params["w_hh"].T, jnp.float32)                 # (H, 4H)
    bg = (params["b_ih"] + params["b_hh"]).reshape(1, 4 * H).astype(jnp.float32)
    w2p = jnp.zeros((H, OP), jnp.float32).at[:, :O].set(params["w2"].T)
    b2p = jnp.zeros((1, OP), jnp.float32).at[:, :O].set(params["b2"])
    return {"w1t": w1t, "b1": b1, "wih_t": wih_t, "whh_t": whh_t,
            "bg": bg, "w2p": w2p, "b2p": b2p}


# ---------------------- DilatedLSTMAgent.forward semantics -------------------

@functools.partial(jax.jit, static_argnames=("out_dim",), donate_argnums=(1,))
def dilated_lstm_agent_forward(inputs, hidden_state, packed, *, out_dim):
    """hidden_state = (tick (1,) int32, state_stack (horizon, Bp, 2H) with [h|c]).

    Mirrors DilatedLSTMAgent.forward: steps the LSTMCell on hx[tick], writes the
    new (h, c) back into slot `tick` (in place via scalar-prefetch indexing +
    input/output aliasing), and advances tick modulo horizon.
    """
    tick, state = hidden_state
    B, D = inputs.shape
    horizon, Bp, H2 = state.shape
    H = H2 // 2
    OP = packed["w2p"].shape[1]

    TB = Bp if Bp <= 256 else 256
    grid = (Bp // TB,)

    x = inputs
    if Bp != B:
        x = jnp.pad(x, ((0, Bp - B), (0, 0)))

    row = lambda i, tick_ref: (i, 0)                 # blocked over batch rows
    const = lambda i, tick_ref: (0, 0)               # weights: resident block
    state_map = lambda i, tick_ref: (tick_ref[0], i, 0)   # dilated-tick slot

    q_pad, new_state = pl.pallas_call(
        dilated_lstm_cell_kernel,
        out_shape=(
            jax.ShapeDtypeStruct((Bp, OP), jnp.float32),
            jax.ShapeDtypeStruct((horizon, Bp, H2), jnp.float32),
        ),
        grid_spec=pltpu.PrefetchScalarGridSpec(
            num_scalar_prefetch=1,
            grid=grid,
            in_specs=[
                pl.BlockSpec((TB, D), row),
                pl.BlockSpec((None, TB, H2), state_map),
                pl.BlockSpec((D, H), const),
                pl.BlockSpec((1, H), const),
                pl.BlockSpec((H, 4 * H), const),
                pl.BlockSpec((H, 4 * H), const),
                pl.BlockSpec((1, 4 * H), const),
                pl.BlockSpec((H, OP), const),
                pl.BlockSpec((1, OP), const),
            ],
            out_specs=(
                pl.BlockSpec((TB, OP), row),
                pl.BlockSpec((None, TB, H2), state_map),
            ),
        ),
        # state stack (call-arg index 2, counting the scalar-prefetch tick)
        # aliases output 1: only slot `tick` is rewritten, other slots persist.
        input_output_aliases={2: 1},
        compiler_params=pltpu.CompilerParams(
            dimension_semantics=("parallel",)),
    )(tick, x, state,
      packed["w1t"], packed["b1"], packed["wih_t"], packed["whh_t"],
      packed["bg"], packed["w2p"], packed["b2p"])

    new_tick = (tick + 1) % horizon
    return q_pad[:B, :out_dim], (new_tick, new_state)


def init_hidden(batch_size, n_agents, hidden_dim, horizon):
    B = batch_size * n_agents
    Bp = _padded_batch(B)
    tick = jnp.zeros((1,), jnp.int32)
    state = jnp.zeros((horizon, Bp, 2 * hidden_dim), jnp.float32)   # [h | c]
    return tick, state


# ------------------------- deterministic param init --------------------------

def make_params(key, input_dim, hidden_dim, output_dim):
    ks = jax.random.split(key, 8)
    scale = 0.1
    return {
        "w1": scale * jax.random.normal(ks[0], (hidden_dim, input_dim), jnp.float32),
        "b1": scale * jax.random.normal(ks[1], (hidden_dim,), jnp.float32),
        "w_ih": scale * jax.random.normal(ks[2], (4 * hidden_dim, hidden_dim), jnp.float32),
        "w_hh": scale * jax.random.normal(ks[3], (4 * hidden_dim, hidden_dim), jnp.float32),
        "b_ih": scale * jax.random.normal(ks[4], (4 * hidden_dim,), jnp.float32),
        "b_hh": scale * jax.random.normal(ks[5], (4 * hidden_dim,), jnp.float32),
        "w2": scale * jax.random.normal(ks[6], (output_dim, hidden_dim), jnp.float32),
        "b2": scale * jax.random.normal(ks[7], (output_dim,), jnp.float32),
    }


# --------------------------- pure-JAX reference -------------------------------

def reference_forward(inputs, hidden_state, params):
    tick, (h_stack, c_stack) = hidden_state          # tick is a Python int here
    horizon = h_stack.shape[0]
    x = jnp.maximum(inputs @ params["w1"].T + params["b1"], 0.0)
    h0, c0 = h_stack[tick], c_stack[tick]
    gates = (x @ params["w_ih"].T + params["b_ih"]
             + h0 @ params["w_hh"].T + params["b_hh"])
    gi, gf, gg, go = jnp.split(gates, 4, axis=1)
    i = jax.nn.sigmoid(gi)
    f = jax.nn.sigmoid(gf)
    g = jnp.tanh(gg)
    o = jax.nn.sigmoid(go)
    c_new = f * c0 + i * g
    h_new = o * jnp.tanh(c_new)
    q = h_new @ params["w2"].T + params["b2"]
    h_stack = h_stack.at[tick].set(h_new)
    c_stack = c_stack.at[tick].set(c_new)
    return q, ((tick + 1) % horizon, (h_stack, c_stack))


# ----------------------------------- main -------------------------------------

if __name__ == "__main__":
    # args.n_agents = 4, args.dilated_lstm_hidden_dim = 32, args.horizon = 3
    n_agents = 4
    batch_size = 2
    B = batch_size * n_agents           # 8 rows fed to the agent
    input_dim = 16                      # input_shape
    hidden_dim = 32                     # args.dilated_lstm_hidden_dim
    output_dim = 8                      # output_shape (n_actions)
    horizon = 3                         # args.horizon

    key = jax.random.PRNGKey(0)
    k_param, k_x = jax.random.split(key)
    params = make_params(k_param, input_dim, hidden_dim, output_dim)
    packed = pack_params(params)        # one-time packing, hoisted out of the step

    hidden = init_hidden(batch_size, n_agents, hidden_dim, horizon)
    hidden_ref = (0, (jnp.zeros((horizon, B, hidden_dim), jnp.float32),
                      jnp.zeros((horizon, B, hidden_dim), jnp.float32)))

    # Step through more than one full horizon so the tick wraps around.
    n_steps = horizon + 1
    xs = jax.random.normal(k_x, (n_steps, B, input_dim), jnp.float32)

    for t in range(n_steps):
        q, hidden = dilated_lstm_agent_forward(xs[t], hidden, packed,
                                               out_dim=output_dim)
        q, hidden = jax.block_until_ready((q, hidden))
        q_ref, hidden_ref = reference_forward(xs[t], hidden_ref, params)

        tick, state_stack = hidden
        tick_ref, (h_stack_ref, c_stack_ref) = hidden_ref
        assert int(tick[0]) == int(tick_ref), (int(tick[0]), int(tick_ref))
        np.testing.assert_allclose(np.asarray(q), np.asarray(q_ref),
                                   rtol=1e-5, atol=1e-5)
        np.testing.assert_allclose(
            np.asarray(state_stack[:, :B, :hidden_dim]),
            np.asarray(h_stack_ref), rtol=1e-5, atol=1e-5)
        np.testing.assert_allclose(
            np.asarray(state_stack[:, :B, hidden_dim:]),
            np.asarray(c_stack_ref), rtol=1e-5, atol=1e-5)

    print("KERNEL_OK")
</pallas_src>

<mosaic_0001>
module attributes {stable_mosaic.version = 11 : i64} {
  func.func @dilated_lstm_cell_kernel(%arg0: i32, %arg1: memref<1xi32, #tpu.memory_space<smem>>, %arg2: memref<8x16xf32, #tpu.memory_space<vmem>>, %arg3: memref<1x8x64xf32, #tpu.memory_space<vmem>>, %arg4: memref<16x32xf32, #tpu.memory_space<vmem>>, %arg5: memref<1x32xf32, #tpu.memory_space<vmem>>, %arg6: memref<32x128xf32, #tpu.memory_space<vmem>>, %arg7: memref<32x128xf32, #tpu.memory_space<vmem>>, %arg8: memref<1x128xf32, #tpu.memory_space<vmem>>, %arg9: memref<32x128xf32, #tpu.memory_space<vmem>>, %arg10: memref<1x128xf32, #tpu.memory_space<vmem>>, %arg11: memref<8x128xf32, #tpu.memory_space<vmem>>, %arg12: memref<1x8x64xf32, #tpu.memory_space<vmem>>) attributes {dimension_semantics = [#tpu.dimension_semantics<parallel>], iteration_bounds = array<i64: 1>, scalar_prefetch = 1 : i64, scratch_operands = 0 : i64, tpu.core_type = #tpu.core_type<tc>, window_params = [{transform_indices = @transform_0, window_bounds = array<i64: 8, 16>}, {transform_indices = @transform_1, window_bounds = array<i64: 1, 8, 64>}, {pipeline_mode = #tpu.pipeline_mode<synchronous>, transform_indices = @transform_2, window_bounds = array<i64: 16, 32>}, {pipeline_mode = #tpu.pipeline_mode<synchronous>, transform_indices = @transform_3, window_bounds = array<i64: 1, 32>}, {pipeline_mode = #tpu.pipeline_mode<synchronous>, transform_indices = @transform_4, window_bounds = array<i64: 32, 128>}, {pipeline_mode = #tpu.pipeline_mode<synchronous>, transform_indices = @transform_5, window_bounds = array<i64: 32, 128>}, {pipeline_mode = #tpu.pipeline_mode<synchronous>, transform_indices = @transform_6, window_bounds = array<i64: 1, 128>}, {pipeline_mode = #tpu.pipeline_mode<synchronous>, transform_indices = @transform_7, window_bounds = array<i64: 32, 128>}, {pipeline_mode = #tpu.pipeline_mode<synchronous>, transform_indices = @transform_8, window_bounds = array<i64: 1, 128>}, {transform_indices = @transform_9, window_bounds = array<i64: 8, 128>}, {transform_indices = @transform_10, window_bounds = array<i64: 1, 8, 64>}]} {
    %c0 = arith.constant 0 : index
    %c0_0 = arith.constant 0 : index
    %0 = vector.load %arg2[%c0, %c0_0] : memref<8x16xf32, #tpu.memory_space<vmem>>, vector<8x16xf32>
    %c0_1 = arith.constant 0 : index
    %c0_2 = arith.constant 0 : index
    %c0_3 = arith.constant 0 : index
    %1 = vector.load %arg3[%c0_1, %c0_2, %c0_3] : memref<1x8x64xf32, #tpu.memory_space<vmem>>, vector<1x8x64xf32>
    %2 = vector.shape_cast %1 : vector<1x8x64xf32> to vector<8x64xf32>
    %3 = vector.extract_strided_slice %2 {offsets = [0, 0], sizes = [8, 32], strides = [1, 1]} : vector<8x64xf32> to vector<8x32xf32>
    %4 = vector.extract_strided_slice %2 {offsets = [0, 32], sizes = [8, 32], strides = [1, 1]} : vector<8x64xf32> to vector<8x32xf32>
    %c0_4 = arith.constant 0 : index
    %c0_5 = arith.constant 0 : index
    %5 = vector.load %arg4[%c0_4, %c0_5] : memref<16x32xf32, #tpu.memory_space<vmem>>, vector<16x32xf32>
    %cst = arith.constant dense<0.000000e+00> : vector<8x32xf32>
    %6 = tpu.matmul %0, %5, %cst {dimension_numbers = #tpu.dot_dimension_numbers<[1], [0], [0], [1], [0, 0, 1, 1], [], []>} : vector<8x16xf32>, vector<16x32xf32>, vector<8x32xf32> -> vector<8x32xf32>
    %c0_6 = arith.constant 0 : index
    %c0_7 = arith.constant 0 : index
    %7 = vector.load %arg5[%c0_6, %c0_7] : memref<1x32xf32, #tpu.memory_space<vmem>>, vector<1x32xf32>
    %8 = vector.broadcast %7 : vector<1x32xf32> to vector<8x32xf32>
    %9 = arith.addf %6, %8 : vector<8x32xf32>
    %cst_8 = arith.constant 0.000000e+00 : f32
    %10 = vector.broadcast %cst_8 : f32 to vector<8x32xf32>
    %11 = arith.maximumf %9, %10 : vector<8x32xf32>
    %c0_9 = arith.constant 0 : index
    %c0_10 = arith.constant 0 : index
    %12 = vector.load %arg6[%c0_9, %c0_10] : memref<32x128xf32, #tpu.memory_space<vmem>>, vector<32x128xf32>
    %cst_11 = arith.constant dense<0.000000e+00> : vector<8x128xf32>
    %13 = tpu.matmul %11, %12, %cst_11 {dimension_numbers = #tpu.dot_dimension_numbers<[1], [0], [0], [1], [0, 0, 1, 1], [], []>} : vector<8x32xf32>, vector<32x128xf32>, vector<8x128xf32> -> vector<8x128xf32>
    %c0_12 = arith.constant 0 : index
    %c0_13 = arith.constant 0 : index
    %14 = vector.load %arg7[%c0_12, %c0_13] : memref<32x128xf32, #tpu.memory_space<vmem>>, vector<32x128xf32>
    %cst_14 = arith.constant dense<0.000000e+00> : vector<8x128xf32>
    %15 = tpu.matmul %3, %14, %cst_14 {dimension_numbers = #tpu.dot_dimension_numbers<[1], [0], [0], [1], [0, 0, 1, 1], [], []>} : vector<8x32xf32>, vector<32x128xf32>, vector<8x128xf32> -> vector<8x128xf32>
    %16 = arith.addf %13, %15 : vector<8x128xf32>
    %c0_15 = arith.constant 0 : index
    %c0_16 = arith.constant 0 : index
    %17 = vector.load %arg8[%c0_15, %c0_16] : memref<1x128xf32, #tpu.memory_space<vmem>>, vector<1x128xf32>
    %18 = vector.broadcast %17 : vector<1x128xf32> to vector<8x128xf32>
    %19 = arith.addf %16, %18 : vector<8x128xf32>
    %20 = arith.negf %19 : vector<8x128xf32>
    %21 = math.exp %20 : vector<8x128xf32>
    %cst_17 = arith.constant 1.000000e+00 : f32
    %22 = vector.broadcast %cst_17 : f32 to vector<8x128xf32>
    %23 = arith.addf %22, %21 : vector<8x128xf32>
    %24 = arith.divf %22, %23 : vector<8x128xf32>
    %25 = math.tanh %19 : vector<8x128xf32>
    %26 = vector.extract_strided_slice %24 {offsets = [0, 0], sizes = [8, 32], strides = [1, 1]} : vector<8x128xf32> to vector<8x32xf32>
    %27 = vector.extract_strided_slice %24 {offsets = [0, 32], sizes = [8, 32], strides = [1, 1]} : vector<8x128xf32> to vector<8x32xf32>
    %28 = vector.extract_strided_slice %25 {offsets = [0, 64], sizes = [8, 32], strides = [1, 1]} : vector<8x128xf32> to vector<8x32xf32>
    %29 = vector.extract_strided_slice %24 {offsets = [0, 96], sizes = [8, 32], strides = [1, 1]} : vector<8x128xf32> to vector<8x32xf32>
    %30 = arith.mulf %27, %4 : vector<8x32xf32>
    %31 = arith.mulf %26, %28 : vector<8x32xf32>
    %32 = arith.addf %30, %31 : vector<8x32xf32>
    %33 = math.tanh %32 : vector<8x32xf32>
    %34 = arith.mulf %29, %33 : vector<8x32xf32>
    %c0_18 = arith.constant 0 : index
    %c0_19 = arith.constant 0 : index
    %35 = vector.load %arg9[%c0_18, %c0_19] : memref<32x128xf32, #tpu.memory_space<vmem>>, vector<32x128xf32>
    %cst_20 = arith.constant dense<0.000000e+00> : vector<8x128xf32>
    %36 = tpu.matmul %34, %35, %cst_20 {dimension_numbers = #tpu.dot_dimension_numbers<[1], [0], [0], [1], [0, 0, 1, 1], [], []>} : vector<8x32xf32>, vector<32x128xf32>, vector<8x128xf32> -> vector<8x128xf32>
    %c0_21 = arith.constant 0 : index
    %c0_22 = arith.constant 0 : index
    %37 = vector.load %arg10[%c0_21, %c0_22] : memref<1x128xf32, #tpu.memory_space<vmem>>, vector<1x128xf32>
    %38 = vector.broadcast %37 : vector<1x128xf32> to vector<8x128xf32>
    %39 = arith.addf %36, %38 : vector<8x128xf32>
    %c0_23 = arith.constant 0 : index
    %c0_24 = arith.constant 0 : index
    %40 = vector.load %arg11[%c0_23, %c0_24] : memref<8x128xf32, #tpu.memory_space<vmem>>, vector<8x128xf32>
    tpu.vector_store %arg11[%c0_23, %c0_24], %39 {strides = array<i32>} : memref<8x128xf32, #tpu.memory_space<vmem>>, vector<8x128xf32>,
    %41 = tpu.concatenate %34, %32 in 1 : vector<8x32xf32>, vector<8x32xf32> -> vector<8x64xf32>
    %c0_25 = arith.constant 0 : index
    %c0_26 = arith.constant 0 : index
    %c0_27 = arith.constant 0 : index
    %42 = vector.load %arg12[%c0_25, %c0_26, %c0_27] : memref<1x8x64xf32, #tpu.memory_space<vmem>>, vector<1x8x64xf32>
    %43 = vector.shape_cast %42 : vector<1x8x64xf32> to vector<8x64xf32>
    %44 = vector.shape_cast %41 : vector<8x64xf32> to vector<1x8x64xf32>
    tpu.vector_store %arg12[%c0_25, %c0_26, %c0_27], %44 {strides = array<i32>} : memref<1x8x64xf32, #tpu.memory_space<vmem>>, vector<1x8x64xf32>,
    return
  }
  func.func @transform_0(%arg0: i32, %arg1: memref<1xi32, #tpu.memory_space<smem>>) -> (i32, i32) {
    %c0_i32 = arith.constant 0 : i32
    %c0_i32_0 = arith.constant 0 : i32
    return %arg0, %c0_i32 : i32, i32
  }
  func.func @transform_1(%arg0: i32, %arg1: memref<1xi32, #tpu.memory_space<smem>>) -> (i32, i32, i32) {
    %c0 = arith.constant 0 : index
    %0 = memref.load %arg1[%c0] : memref<1xi32, #tpu.memory_space<smem>>
    %c0_i32 = arith.constant 0 : i32
    %c0_i32_0 = arith.constant 0 : i32
    return %0, %arg0, %c0_i32 : i32, i32, i32
  }
  func.func @transform_2(%arg0: i32, %arg1: memref<1xi32, #tpu.memory_space<smem>>) -> (i32, i32) {
    %c0_i32 = arith.constant 0 : i32
    %c0_i32_0 = arith.constant 0 : i32
    %c0_i32_1 = arith.constant 0 : i32
    return %c0_i32, %c0_i32_0 : i32, i32
  }
  func.func @transform_3(%arg0: i32, %arg1: memref<1xi32, #tpu.memory_space<smem>>) -> (i32, i32) {
    %c0_i32 = arith.constant 0 : i32
    %c0_i32_0 = arith.constant 0 : i32
    %c0_i32_1 = arith.constant 0 : i32
    return %c0_i32, %c0_i32_0 : i32, i32
  }
  func.func @transform_4(%arg0: i32, %arg1: memref<1xi32, #tpu.memory_space<smem>>) -> (i32, i32) {
    %c0_i32 = arith.constant 0 : i32
    %c0_i32_0 = arith.constant 0 : i32
    %c0_i32_1 = arith.constant 0 : i32
    return %c0_i32, %c0_i32_0 : i32, i32
  }
  func.func @transform_5(%arg0: i32, %arg1: memref<1xi32, #tpu.memory_space<smem>>) -> (i32, i32) {
    %c0_i32 = arith.constant 0 : i32
    %c0_i32_0 = arith.constant 0 : i32
    %c0_i32_1 = arith.constant 0 : i32
    return %c0_i32, %c0_i32_0 : i32, i32
  }
  func.func @transform_6(%arg0: i32, %arg1: memref<1xi32, #tpu.memory_space<smem>>) -> (i32, i32) {
    %c0_i32 = arith.constant 0 : i32
    %c0_i32_0 = arith.constant 0 : i32
    %c0_i32_1 = arith.constant 0 : i32
    return %c0_i32, %c0_i32_0 : i32, i32
  }
  func.func @transform_7(%arg0: i32, %arg1: memref<1xi32, #tpu.memory_space<smem>>) -> (i32, i32) {
    %c0_i32 = arith.constant 0 : i32
    %c0_i32_0 = arith.constant 0 : i32
    %c0_i32_1 = arith.constant 0 : i32
    return %c0_i32, %c0_i32_0 : i32, i32
  }
  func.func @transform_8(%arg0: i32, %arg1: memref<1xi32, #tpu.memory_space<smem>>) -> (i32, i32) {
    %c0_i32 = arith.constant 0 : i32
    %c0_i32_0 = arith.constant 0 : i32
    %c0_i32_1 = arith.constant 0 : i32
    return %c0_i32, %c0_i32_0 : i32, i32
  }
  func.func @transform_9(%arg0: i32, %arg1: memref<1xi32, #tpu.memory_space<smem>>) -> (i32, i32) {
    %c0_i32 = arith.constant 0 : i32
    %c0_i32_0 = arith.constant 0 : i32
    return %arg0, %c0_i32 : i32, i32
  }
  func.func @transform_10(%arg0: i32, %arg1: memref<1xi32, #tpu.memory_space<smem>>) -> (i32, i32, i32) {
    %c0 = arith.constant 0 : index
    %0 = memref.load %arg1[%c0] : memref<1xi32, #tpu.memory_space<smem>>
    %c0_i32 = arith.constant 0 : i32
    %c0_i32_0 = arith.constant 0 : i32
    return %0, %arg0, %c0_i32 : i32, i32, i32
  }
}

</mosaic_0001>

<llo_original>
// kernel: dilated_lstm_agent_forward.1
$region0: #{dilated_lstm_agent_forward.1}
  #allocation0 [shape = 'u32[]', space=smem, size = 0x4, offset = 0x4, fixed_abs, tag = 'smem constant byte address 0x4 - core index']
  #allocation1 [shape = 'u32[144,128]{1,0:T(1,128)}', space=vmem, size = 0x12000, scoped, tag = 'internal scratch']
  #allocation2 [shape = 's32[1]{0}', space=sflag, size = 0x4, scoped, tag = 'scoped memory for dilated_lstm_agent_forward.1']
  #allocation3 [shape = 's32[1]{0:T(128)S(6)}', space=smem, size = 0x200, scoped, tag = 'prefetched SMEM operand 0']
  %s0 = inlined_call_operand.<no memory space> [shape: s32[1], index: 0, kind: input, shape index: {}]
  %s1 = inlined_call_operand.vmem [shape: f32[8,16], index: 1, kind: input, shape index: {}]
  %s2 = inlined_call_operand.vmem [shape: f32[3,8,64], index: 2, kind: input, shape index: {}, may-alias: {2,11}]
  %s3 = inlined_call_operand.hbm [shape: f32[16,32], index: 3, kind: input, shape index: {}]
  %s4 = inlined_call_operand.vmem [shape: f32[1,32], index: 4, kind: input, shape index: {}]
  %s5 = inlined_call_operand.hbm [shape: f32[32,128], index: 5, kind: input, shape index: {}]
  %s6 = inlined_call_operand.hbm [shape: f32[32,128], index: 6, kind: input, shape index: {}]
  %s7 = inlined_call_operand.vmem [shape: f32[1,128], index: 7, kind: input, shape index: {}]
  %s8 = inlined_call_operand.hbm [shape: f32[32,128], index: 8, kind: input, shape index: {}]
  %s9 = inlined_call_operand.hbm [shape: f32[1,128], index: 9, kind: input, shape index: {}]
  %s10 = inlined_call_operand.hbm [shape: f32[8,128], index: 10, kind: output, shape index: {0}]
  %s11 = inlined_call_operand.vmem [shape: f32[3,8,64], index: 11, kind: output, shape index: {1}, may-alias: {2,11}]
  %12 = xla_tuple %s10, %s11
  %s13 = sld [smem:[#allocation0]]
  $region74: #{dilated_lstm_agent_forward.1} parent=0
    _
  %s15 = ssub.s32 1, %s13
  %s16 = scalar_select 0, %s15, %s13
  %17 = sst [smem:[#allocation3]] %s0
  $region1: #{dilated_lstm_agent_forward.1} parent=0
    #allocation4 [shape = 'u8[8192]{0}', space=vmem, size = 0x2000, scoped, tag = 'input window, operand 3, single buffered']
    #allocation5 [shape = 's32[1]{0}', space=sflag, size = 0x4, scoped, tag = 'scoped memory for dilated_lstm_agent_forward.1']
    #allocation6 [shape = 's32[1]{0}', space=sflag, size = 0x4, scoped, tag = 'scoped memory for dilated_lstm_agent_forward.1']
    #allocation7 [shape = 'u8[16384]{0}', space=vmem, size = 0x4000, scoped, tag = 'input window, operand 5, single buffered']
    #allocation8 [shape = 's32[1]{0}', space=sflag, size = 0x4, scoped, tag = 'scoped memory for dilated_lstm_agent_forward.1']
    #allocation9 [shape = 'u8[16384]{0}', space=vmem, size = 0x4000, scoped, tag = 'input window, operand 6, single buffered']
    #allocation10 [shape = 'u8[16384]{0}', space=vmem, size = 0x4000, scoped, tag = 'input window, operand 8, single buffered']
    #allocation11 [shape = 's32[1]{0}', space=sflag, size = 0x4, scoped, tag = 'scoped memory for dilated_lstm_agent_forward.1']
    #allocation12 [shape = 'u8[512]{0}', space=vmem, size = 0x400, scoped, tag = 'input window, operand 9, single buffered']
    #allocation13 [shape = 'u8[4096]{0}', space=vmem, size = 0x1000, scoped, tag = 'output window, operand 0, single buffered']
    %18 = vsyncpa [#allocation5], 0
    %19 = vsyncpa [#allocation8], 0
    %20 = vsyncpa [#allocation11], 0
    %21 = vsyncpa [#allocation6], 0
    // Predicated region
    $region2: #{dilated_lstm_agent_forward.1} parent=1 // pred_check
      _
    $region3: #{dilated_lstm_agent_forward.1} parent=1 // pred_check_branch
      %23 = sbr.rel (0) target = $region5
    $region4: #{dilated_lstm_agent_forward.1} parent=1 // pred_region
      _
    $region5: #{dilated_lstm_agent_forward.1} parent=1 // pred_fallthru
      _
    // Predicated region
    $region6: #{dilated_lstm_agent_forward.1} parent=1 // pred_check
      _
    $region7: #{dilated_lstm_agent_forward.1} parent=1 // pred_check_branch
      %25 = sbr.rel (0) target = $region9
    $region8: #{dilated_lstm_agent_forward.1} parent=1 // pred_region
      %s26 = sld [smem:[#allocation3]]
      %p27 = scmp.lt.s32.totalorder %s26, 2
      %s28 = scalar_select %p27, %s26, 2
      %s29 = smul.addr %s28, 8
      %s30 = scalar_lea.vmem %s2, %s29
      %s31 = sld [smem:[#allocation3]]
    $region9: #{dilated_lstm_agent_forward.1} parent=1 // pred_fallthru
      _
    // Predicated region
    $region10: #{dilated_lstm_agent_forward.1} parent=1 // pred_check
      _
    $region11: #{dilated_lstm_agent_forward.1} parent=1 // pred_check_branch
      %33 = sbr.rel (0) target = $region13
    $region12: #{dilated_lstm_agent_forward.1} parent=1 // pred_region
      %s35 = ssub.s32 256, 256
      %36 = vsyncadd [#allocation5], %s35
      %s37 = sshll.u32 [#allocation4], 4
      %s38 = int_to_ptr.vmem [resolvable:$true] %s37
      %43 = dma.hbm_to_vmem [thread:$0]  %s3, 256, %s38, [#allocation5], 128, 128, 8
    $region13: #{dilated_lstm_agent_forward.1} parent=1 // pred_fallthru
      _
    // Predicated region
    $region14: #{dilated_lstm_agent_forward.1} parent=1 // pred_check
      _
    $region15: #{dilated_lstm_agent_forward.1} parent=1 // pred_check_branch
      %45 = sbr.rel (0) target = $region17
    $region16: #{dilated_lstm_agent_forward.1} parent=1 // pred_region
      _
    $region17: #{dilated_lstm_agent_forward.1} parent=1 // pred_fallthru
      _
    // Predicated region
    $region18: #{dilated_lstm_agent_forward.1} parent=1 // pred_check
      _
    $region19: #{dilated_lstm_agent_forward.1} parent=1 // pred_check_branch
      %47 = sbr.rel (0) target = $region21
    $region20: #{dilated_lstm_agent_forward.1} parent=1 // pred_region
      %s49 = ssub.s32 512, 512
      %50 = vsyncadd [#allocation8], %s49
      %s51 = sshll.u32 [#allocation7], 4
      %s52 = int_to_ptr.vmem [resolvable:$true] %s51
      %57 = dma.hbm_to_vmem [thread:$0]  %s5, 512, %s52, [#allocation8], 128, 128, 8
    $region21: #{dilated_lstm_agent_forward.1} parent=1 // pred_fallthru
      _
    // Predicated region
    $region22: #{dilated_lstm_agent_forward.1} parent=1 // pred_check
      _
    $region23: #{dilated_lstm_agent_forward.1} parent=1 // pred_check_branch
      %59 = sbr.rel (0) target = $region25
    $region24: #{dilated_lstm_agent_forward.1} parent=1 // pred_region
      %s61 = ssub.s32 512, 512
      %62 = vsyncadd [#allocation8], %s61
      %s63 = sshll.u32 [#allocation9], 4
      %s64 = int_to_ptr.vmem [resolvable:$true] %s63
      %69 = dma.hbm_to_vmem [thread:$0]  %s6, 512, %s64, [#allocation8], 128, 128, 8
    $region25: #{dilated_lstm_agent_forward.1} parent=1 // pred_fallthru
      _
    // Predicated region
    $region26: #{dilated_lstm_agent_forward.1} parent=1 // pred_check
      _
    $region27: #{dilated_lstm_agent_forward.1} parent=1 // pred_check_branch
      %71 = sbr.rel (0) target = $region29
    $region28: #{dilated_lstm_agent_forward.1} parent=1 // pred_region
      _
    $region29: #{dilated_lstm_agent_forward.1} parent=1 // pred_fallthru
      _
    // Predicated region
    $region30: #{dilated_lstm_agent_forward.1} parent=1 // pred_check
      _
    $region31: #{dilated_lstm_agent_forward.1} parent=1 // pred_check_branch
      %73 = sbr.rel (0) target = $region33
    $region32: #{dilated_lstm_agent_forward.1} parent=1 // pred_region
      %s75 = ssub.s32 512, 512
      %76 = vsyncadd [#allocation11], %s75
      %s77 = sshll.u32 [#allocation10], 4
      %s78 = int_to_ptr.vmem [resolvable:$true] %s77
      %83 = dma.hbm_to_vmem [thread:$0]  %s8, 512, %s78, [#allocation11], 128, 128, 8
    $region33: #{dilated_lstm_agent_forward.1} parent=1 // pred_fallthru
      _
    // Predicated region
    $region34: #{dilated_lstm_agent_forward.1} parent=1 // pred_check
      _
    $region35: #{dilated_lstm_agent_forward.1} parent=1 // pred_check_branch
      %85 = sbr.rel (0) target = $region37
    $region36: #{dilated_lstm_agent_forward.1} parent=1 // pred_region
      %s87 = ssub.s32 16, 16
      %88 = vsyncadd [#allocation11], %s87
      %s90 = sshll.u32 [#allocation12], 4
      %s91 = int_to_ptr.vmem [resolvable:$true] %s90
      %93 = dma.hbm_to_vmem [thread:$0]  %s9, 16, %s91, [#allocation11]
    $region37: #{dilated_lstm_agent_forward.1} parent=1 // pred_fallthru
      _
    // Predicated region
    $region38: #{dilated_lstm_agent_forward.1} parent=1 // pred_check
      _
    $region39: #{dilated_lstm_agent_forward.1} parent=1 // pred_check_branch
      %95 = sbr.rel (0) target = $region41
    $region40: #{dilated_lstm_agent_forward.1} parent=1 // pred_region
      %96 = dma.done [#allocation5], 256
    $region41: #{dilated_lstm_agent_forward.1} parent=1 // pred_fallthru
      _
    // Predicated region
    $region42: #{dilated_lstm_agent_forward.1} parent=1 // pred_check
      _
    $region43: #{dilated_lstm_agent_forward.1} parent=1 // pred_check_branch
      %98 = sbr.rel (0) target = $region45
    $region44: #{dilated_lstm_agent_forward.1} parent=1 // pred_region
      %99 = dma.done [#allocation8], 512
    $region45: #{dilated_lstm_agent_forward.1} parent=1 // pred_fallthru
      _
    // Predicated region
    $region46: #{dilated_lstm_agent_forward.1} parent=1 // pred_check
      _
    $region47: #{dilated_lstm_agent_forward.1} parent=1 // pred_check_branch
      %101 = sbr.rel (0) target = $region49
    $region48: #{dilated_lstm_agent_forward.1} parent=1 // pred_region
      %102 = dma.done [#allocation8], 512
    $region49: #{dilated_lstm_agent_forward.1} parent=1 // pred_fallthru
      _
    // Predicated region
    $region50: #{dilated_lstm_agent_forward.1} parent=1 // pred_check
      _
    $region51: #{dilated_lstm_agent_forward.1} parent=1 // pred_check_branch
      %104 = sbr.rel (0) target = $region53
    $region52: #{dilated_lstm_agent_forward.1} parent=1 // pred_region
      %105 = dma.done [#allocation11], 512
    $region53: #{dilated_lstm_agent_forward.1} parent=1 // pred_fallthru
      _
    // Predicated region
    $region54: #{dilated_lstm_agent_forward.1} parent=1 // pred_check
      _
    $region55: #{dilated_lstm_agent_forward.1} parent=1 // pred_check_branch
      %107 = sbr.rel (0) target = $region57
    $region56: #{dilated_lstm_agent_forward.1} parent=1 // pred_region
      %108 = dma.done [#allocation11], 16
    $region57: #{dilated_lstm_agent_forward.1} parent=1 // pred_fallthru
      _
    %s109 = sld [smem:[#allocation3]]
    %p110 = scmp.lt.s32.totalorder %s109, 2
    %s111 = scalar_select %p110, %s109, 2
    %s112 = smul.addr %s111, 8
    %s113 = scalar_lea.vmem %s2, %s112
    %s114 = sld [smem:[#allocation3]]
    %p115 = scmp.lt.s32.totalorder %s114, 2
    %s116 = scalar_select %p115, %s114, 2
    %s117 = smul.addr %s116, 8
    %s118 = scalar_lea.vmem %s11, %s117
    %s119 = sld [smem:[#allocation3]]
    %p120 = scmp.lt.s32.totalorder %s119, 2
    %s121 = scalar_select %p120, %s119, 2
    %s122 = smul.addr %s121, 8
    %s123 = scalar_lea.vmem %s2, %s122
    %s124 = sld [smem:[#allocation3]]
    %s125 = sld [smem:[#allocation3]]
    %p126 = scmp.lt.s32.totalorder %s125, 2
    %s127 = scalar_select %p126, %s125, 2
    %s128 = smul.addr %s127, 8
    %s129 = scalar_lea.vmem %s11, %s128
    %s130 = sld [smem:[#allocation3]]
    %v131 = vld [vmem:[%s1] sm:$0xff]
    %v132 = vld [vmem:[%s123] sm:$0xff]
    %v133 = vld [vmem:[#allocation4] sm:$0xff]
    %v134 = vld [vmem:[#allocation4 + $0x8] sm:$0xff]
    %v135 = vld [vmem:[%s4] sm:$0x1]
    %v137 = vlaneseq
    %v138 = vshrl.u32 %v137, 7
    %v139 = vsub.s32 0, %v138
    %v140 = vrot.slane %v135, %v139
    %vm142 = vcmask 130048
    %v144 = vsel %vm142, %v131, 0
    %146 = vmatprep.subr.mxu0 0.0
    %147 = vmatpush1.msra.mxu0 %v133
    %148 = vmatprep.subr.mxu0 0.0
    %149 = vmatpush1.msra.mxu0 %v134
    %150 = vmatprep.subr.mxu0 0.0
    %151 = vmatpush1.msra.mxu0 0.0
    %152 = vmatprep.subr.mxu0 0.0
    %153 = vmatpush1.msra.mxu0 0.0
    %154 = vmatprep.subr.mxu0 0.0
    %155 = vmatpush1.msra.mxu0 0.0
    %156 = vmatprep.subr.mxu0 0.0
    %157 = vmatpush1.msra.mxu0 0.0
    %158 = vmatprep.subr.mxu0 0.0
    %159 = vmatpush1.msra.mxu0 0.0
    %160 = vmatprep.subr.mxu0 0.0
    %161 = vmatpush1.msra.mxu0 0.0
    %162 = vmatprep.subr.mxu0 0.0
    %163 = vmatpush1.msra.mxu0 0.0
    %164 = vmatprep.subr.mxu0 0.0
    %165 = vmatpush1.msra.mxu0 0.0
    %166 = vmatprep.subr.mxu0 0.0
    %167 = vmatpush1.msra.mxu0 0.0
    %168 = vmatprep.subr.mxu0 0.0
    %169 = vmatpush1.msra.mxu0 0.0
    %170 = vmatprep.subr.mxu0 0.0
    %171 = vmatpush1.msra.mxu0 0.0
    %172 = vmatprep.subr.mxu0 0.0
    %173 = vmatpush1.msra.mxu0 0.0
    %174 = vmatprep.subr.mxu0 0.0
    %175 = vmatpush1.msra.mxu0 0.0
    %176 = vmatprep.subr.mxu0 0.0
    %177 = vmatpush1.msra.mxu0 0.0
    %178 = vmatprep.subr.mxu0 0.0
    %179 = vmatpush1.msra.mxu0 0.0
    %180 = vmatprep.subr.mxu0 0.0
    %181 = vmatpush1.msra.mxu0 0.0
    %182 = vmatprep.subr.mxu0 0.0
    %183 = vmatpush1.msra.mxu0 0.0
    %184 = vmatprep.subr.mxu0 0.0
    %185 = vmatpush1.msra.mxu0 0.0
    %186 = vmatprep.subr.mxu0 0.0
    %187 = vmatpush1.msra.mxu0 0.0
    %188 = vmatprep.subr.mxu0 0.0
    %189 = vmatpush1.msra.mxu0 0.0
    %190 = vmatprep.subr.mxu0 0.0
    %191 = vmatpush1.msra.mxu0 0.0
    %192 = vmatprep.subr.mxu0 0.0
    %193 = vmatpush1.msra.mxu0 0.0
    %194 = vmatprep.subr.mxu0 0.0
    %195 = vmatpush1.msra.mxu0 0.0
    %196 = vmatprep.subr.mxu0 0.0
    %197 = vmatpush1.msra.mxu0 0.0
    %198 = vmatprep.subr.mxu0 0.0
    %199 = vmatpush1.msra.mxu0 0.0
    %200 = vmatprep.subr.mxu0 0.0
    %201 = vmatpush1.msra.mxu0 0.0
    %202 = vmatprep.subr.mxu0 0.0
    %203 = vmatpush1.msra.mxu0 0.0
    %204 = vmatprep.subr.mxu0 0.0
    %205 = vmatpush1.msra.mxu0 0.0
    %206 = vmatprep.subr.mxu0 0.0
    %207 = vmatpush1.msra.mxu0 0.0
    %208 = vmatprep.subr.mxu0 0.0
    %209 = vmatpush1.msra.mxu0 0.0
    %210 = vmatprep.mubr.f32.mxu0 0.0
    %211 = vmatmul.mubr.f32.gmra.mrb[0].mxu0 %v144
    %v212 = vpop.f32.mrb[0].mxu0
    %v213 = vadd.f32 %v140, %v212
    %v214 = vpop.f32.mrb[0].mxu0
    %215 = vdwg.mxu0
    %v216 = vmax.f32 %v213, 0.0
    %v217 = vld [vmem:[#allocation7] sm:$0xff]
    %v218 = vld [vmem:[#allocation7 + $0x8] sm:$0xff]
    %v219 = vld [vmem:[#allocation7 + $0x10] sm:$0xff]
    %v220 = vld [vmem:[#allocation7 + $0x18] sm:$0xff]
    %v221 = vld [vmem:[#allocation9] sm:$0xff]
    %v222 = vld [vmem:[#allocation9 + $0x8] sm:$0xff]
    %v223 = vld [vmem:[#allocation9 + $0x10] sm:$0xff]
    %v224 = vld [vmem:[#allocation9 + $0x18] sm:$0xff]
    %vm225 = vcmask 261120
    %v227 = vsel %vm225, %v132, 0
    %229 = vmatprep.subr.mxu0 0.0
    %230 = vmatpush1.msra.mxu0 %v221
    %231 = vmatprep.subr.mxu0 0.0
    %232 = vmatpush1.msra.mxu0 %v222
    %233 = vmatprep.subr.mxu0 0.0
    %234 = vmatpush1.msra.mxu0 %v223
    %235 = vmatprep.subr.mxu0 0.0
    %236 = vmatpush1.msra.mxu0 %v224
    %237 = vmatprep.subr.mxu0 0.0
    %238 = vmatpush1.msra.mxu0 0.0
    %239 = vmatprep.subr.mxu0 0.0
    %240 = vmatpush1.msra.mxu0 0.0
    %241 = vmatprep.subr.mxu0 0.0
    %242 = vmatpush1.msra.mxu0 0.0
    %243 = vmatprep.subr.mxu0 0.0
    %244 = vmatpush1.msra.mxu0 0.0
    %245 = vmatprep.subr.mxu0 0.0
    %246 = vmatpush1.msra.mxu0 0.0
    %247 = vmatprep.subr.mxu0 0.0
    %248 = vmatpush1.msra.mxu0 0.0
    %249 = vmatprep.subr.mxu0 0.0
    %250 = vmatpush1.msra.mxu0 0.0
    %251 = vmatprep.subr.mxu0 0.0
    %252 = vmatpush1.msra.mxu0 0.0
    %253 = vmatprep.subr.mxu0 0.0
    %254 = vmatpush1.msra.mxu0 0.0
    %255 = vmatprep.subr.mxu0 0.0
    %256 = vmatpush1.msra.mxu0 0.0
    %257 = vmatprep.subr.mxu0 0.0
    %258 = vmatpush1.msra.mxu0 0.0
    %259 = vmatprep.subr.mxu0 0.0
    %260 = vmatpush1.msra.mxu0 0.0
    %261 = vmatprep.subr.mxu0 0.0
    %262 = vmatpush1.msra.mxu0 0.0
    %263 = vmatprep.subr.mxu0 0.0
    %264 = vmatpush1.msra.mxu0 0.0
    %265 = vmatprep.subr.mxu0 0.0
    %266 = vmatpush1.msra.mxu0 0.0
    %267 = vmatprep.subr.mxu0 0.0
    %268 = vmatpush1.msra.mxu0 0.0
    %269 = vmatprep.subr.mxu0 0.0
    %270 = vmatpush1.msra.mxu0 0.0
    %271 = vmatprep.subr.mxu0 0.0
    %272 = vmatpush1.msra.mxu0 0.0
    %273 = vmatprep.subr.mxu0 0.0
    %274 = vmatpush1.msra.mxu0 0.0
    %275 = vmatprep.subr.mxu0 0.0
    %276 = vmatpush1.msra.mxu0 0.0
    %277 = vmatprep.subr.mxu0 0.0
    %278 = vmatpush1.msra.mxu0 0.0
    %279 = vmatprep.subr.mxu0 0.0
    %280 = vmatpush1.msra.mxu0 0.0
    %281 = vmatprep.subr.mxu0 0.0
    %282 = vmatpush1.msra.mxu0 0.0
    %283 = vmatprep.subr.mxu0 0.0
    %284 = vmatpush1.msra.mxu0 0.0
    %285 = vmatprep.subr.mxu0 0.0
    %286 = vmatpush1.msra.mxu0 0.0
    %287 = vmatprep.subr.mxu0 0.0
    %288 = vmatpush1.msra.mxu0 0.0
    %289 = vmatprep.subr.mxu0 0.0
    %290 = vmatpush1.msra.mxu0 0.0
    %291 = vmatprep.subr.mxu0 0.0
    %292 = vmatpush1.msra.mxu0 0.0
    %293 = vmatprep.mubr.f32.mxu0 0.0
    %294 = vmatmul.mubr.f32.gmra.mrb[0].mxu0 %v227
    %v295 = vpop.f32.mrb[0].mxu0
    %v296 = vadd.f32 0.0, %v295
    %v297 = vpop.f32.mrb[0].mxu0
    %298 = vdwg.mxu0
    %v300 = vsel %vm225, %v216, 0
    %302 = vmatprep.subr.mxu0 0.0
    %303 = vmatpush1.msra.mxu0 %v217
    %304 = vmatprep.subr.mxu0 0.0
    %305 = vmatpush1.msra.mxu0 %v218
    %306 = vmatprep.subr.mxu0 0.0
    %307 = vmatpush1.msra.mxu0 %v219
    %308 = vmatprep.subr.mxu0 0.0
    %309 = vmatpush1.msra.mxu0 %v220
    %310 = vmatprep.subr.mxu0 0.0
    %311 = vmatpush1.msra.mxu0 0.0
    %312 = vmatprep.subr.mxu0 0.0
    %313 = vmatpush1.msra.mxu0 0.0
    %314 = vmatprep.subr.mxu0 0.0
    %315 = vmatpush1.msra.mxu0 0.0
    %316 = vmatprep.subr.mxu0 0.0
    %317 = vmatpush1.msra.mxu0 0.0
    %318 = vmatprep.subr.mxu0 0.0
    %319 = vmatpush1.msra.mxu0 0.0
    %320 = vmatprep.subr.mxu0 0.0
    %321 = vmatpush1.msra.mxu0 0.0
    %322 = vmatprep.subr.mxu0 0.0
    %323 = vmatpush1.msra.mxu0 0.0
    %324 = vmatprep.subr.mxu0 0.0
    %325 = vmatpush1.msra.mxu0 0.0
    %326 = vmatprep.subr.mxu0 0.0
    %327 = vmatpush1.msra.mxu0 0.0
    %328 = vmatprep.subr.mxu0 0.0
    %329 = vmatpush1.msra.mxu0 0.0
    %330 = vmatprep.subr.mxu0 0.0
    %331 = vmatpush1.msra.mxu0 0.0
    %332 = vmatprep.subr.mxu0 0.0
    %333 = vmatpush1.msra.mxu0 0.0
    %334 = vmatprep.subr.mxu0 0.0
    %335 = vmatpush1.msra.mxu0 0.0
    %336 = vmatprep.subr.mxu0 0.0
    %337 = vmatpush1.msra.mxu0 0.0
    %338 = vmatprep.subr.mxu0 0.0
    %339 = vmatpush1.msra.mxu0 0.0
    %340 = vmatprep.subr.mxu0 0.0
    %341 = vmatpush1.msra.mxu0 0.0
    %342 = vmatprep.subr.mxu0 0.0
    %343 = vmatpush1.msra.mxu0 0.0
    %344 = vmatprep.subr.mxu0 0.0
    %345 = vmatpush1.msra.mxu0 0.0
    %346 = vmatprep.subr.mxu0 0.0
    %347 = vmatpush1.msra.mxu0 0.0
    %348 = vmatprep.subr.mxu0 0.0
    %349 = vmatpush1.msra.mxu0 0.0
    %350 = vmatprep.subr.mxu0 0.0
    %351 = vmatpush1.msra.mxu0 0.0
    %352 = vmatprep.subr.mxu0 0.0
    %353 = vmatpush1.msra.mxu0 0.0
    %354 = vmatprep.subr.mxu0 0.0
    %355 = vmatpush1.msra.mxu0 0.0
    %356 = vmatprep.subr.mxu0 0.0
    %357 = vmatpush1.msra.mxu0 0.0
    %358 = vmatprep.subr.mxu0 0.0
    %359 = vmatpush1.msra.mxu0 0.0
    %360 = vmatprep.subr.mxu0 0.0
    %361 = vmatpush1.msra.mxu0 0.0
    %362 = vmatprep.subr.mxu0 0.0
    %363 = vmatpush1.msra.mxu0 0.0
    %364 = vmatprep.subr.mxu0 0.0
    %365 = vmatpush1.msra.mxu0 0.0
    %366 = vmatprep.mubr.f32.mxu0 0.0
    %367 = vmatmul.mubr.f32.gmra.mrb[0].mxu0 %v300
    %v368 = vpop.f32.mrb[0].mxu0
    %v369 = vadd.f32 %v296, %v368
    %v370 = vpop.f32.mrb[0].mxu0
    %371 = vdwg.mxu0
    %v372 = vld [vmem:[%s7] sm:$0x1]
    %v374 = vlaneseq
    %v375 = vshrl.u32 %v374, 7
    %v376 = vsub.s32 0, %v375
    %v377 = vrot.slane %v372, %v376
    %v379 = vadd.f32 %v369, %v377
    %v380 = vxor.u32 %v379, 2147483648
    %v381 = vmul.f32 %v380, 1.442695
    %v382 = vpow.pop %v381
    %v383 = vadd.f32 %v382, 1.0
    %v384 = vrcp.pop %v383
    %v385 = vmul.f32 1.0, %v384
    %v386 = vtanh.pop %v379
    %v387 = vmul.f32 %v385, %v132
    %389 = vrot.lane.b32.xlu0 %v386, 64
    %v390 = vpop.permute.xlu0 %389
    %v392 = vmul.f32 %v385, %v390
    %394 = vrot.lane.b32.xlu0 %v392, 32
    %v395 = vpop.permute.xlu0 %394
    %v397 = vadd.f32 %v387, %v395
    %v398 = vtanh.pop %v397
    %400 = vrot.lane.b32.xlu0 %v398, 64
    %v401 = vpop.permute.xlu0 %400
    %v403 = vmul.f32 %v385, %v401
    %v404 = vld [vmem:[#allocation10] sm:$0xff]
    %v405 = vld [vmem:[#allocation10 + $0x8] sm:$0xff]
    %v406 = vld [vmem:[#allocation10 + $0x10] sm:$0xff]
    %v407 = vld [vmem:[#allocation10 + $0x18] sm:$0xff]
    %v408 = vld [vmem:[#allocation12] sm:$0x1]
    %v410 = vlaneseq
    %v411 = vshrl.u32 %v410, 7
    %v412 = vsub.s32 0, %v411
    %v413 = vrot.slane %v408, %v412
    %416 = vrot.lane.b32.xlu0 %v403, 32
    %v417 = vpop.permute.xlu0 %416
    %v418 = vsel %vm225, %v417, 0
    %420 = vmatprep.subr.mxu0 0.0
    %421 = vmatpush1.msra.mxu0 %v404
    %422 = vmatprep.subr.mxu0 0.0
    %423 = vmatpush1.msra.mxu0 %v405
    %424 = vmatprep.subr.mxu0 0.0
    %425 = vmatpush1.msra.mxu0 %v406
    %426 = vmatprep.subr.mxu0 0.0
    %427 = vmatpush1.msra.mxu0 %v407
    %428 = vmatprep.subr.mxu0 0.0
    %429 = vmatpush1.msra.mxu0 0.0
    %430 = vmatprep.subr.mxu0 0.0
    %431 = vmatpush1.msra.mxu0 0.0
    %432 = vmatprep.subr.mxu0 0.0
    %433 = vmatpush1.msra.mxu0 0.0
    %434 = vmatprep.subr.mxu0 0.0
    %435 = vmatpush1.msra.mxu0 0.0
    %436 = vmatprep.subr.mxu0 0.0
    %437 = vmatpush1.msra.mxu0 0.0
    %438 = vmatprep.subr.mxu0 0.0
    %439 = vmatpush1.msra.mxu0 0.0
    %440 = vmatprep.subr.mxu0 0.0
    %441 = vmatpush1.msra.mxu0 0.0
    %442 = vmatprep.subr.mxu0 0.0
    %443 = vmatpush1.msra.mxu0 0.0
    %444 = vmatprep.subr.mxu0 0.0
    %445 = vmatpush1.msra.mxu0 0.0
    %446 = vmatprep.subr.mxu0 0.0
    %447 = vmatpush1.msra.mxu0 0.0
    %448 = vmatprep.subr.mxu0 0.0
    %449 = vmatpush1.msra.mxu0 0.0
    %450 = vmatprep.subr.mxu0 0.0
    %451 = vmatpush1.msra.mxu0 0.0
    %452 = vmatprep.subr.mxu0 0.0
    %453 = vmatpush1.msra.mxu0 0.0
    %454 = vmatprep.subr.mxu0 0.0
    %455 = vmatpush1.msra.mxu0 0.0
    %456 = vmatprep.subr.mxu0 0.0
    %457 = vmatpush1.msra.mxu0 0.0
    %458 = vmatprep.subr.mxu0 0.0
    %459 = vmatpush1.msra.mxu0 0.0
    %460 = vmatprep.subr.mxu0 0.0
    %461 = vmatpush1.msra.mxu0 0.0
    %462 = vmatprep.subr.mxu0 0.0
    %463 = vmatpush1.msra.mxu0 0.0
    %464 = vmatprep.subr.mxu0 0.0
    %465 = vmatpush1.msra.mxu0 0.0
    %466 = vmatprep.subr.mxu0 0.0
    %467 = vmatpush1.msra.mxu0 0.0
    %468 = vmatprep.subr.mxu0 0.0
    %469 = vmatpush1.msra.mxu0 0.0
    %470 = vmatprep.subr.mxu0 0.0
    %471 = vmatpush1.msra.mxu0 0.0
    %472 = vmatprep.subr.mxu0 0.0
    %473 = vmatpush1.msra.mxu0 0.0
    %474 = vmatprep.subr.mxu0 0.0
    %475 = vmatpush1.msra.mxu0 0.0
    %476 = vmatprep.subr.mxu0 0.0
    %477 = vmatpush1.msra.mxu0 0.0
    %478 = vmatprep.subr.mxu0 0.0
    %479 = vmatpush1.msra.mxu0 0.0
    %480 = vmatprep.subr.mxu0 0.0
    %481 = vmatpush1.msra.mxu0 0.0
    %482 = vmatprep.subr.mxu0 0.0
    %483 = vmatpush1.msra.mxu0 0.0
    %484 = vmatprep.mubr.f32.mxu0 0.0
    %485 = vmatmul.mubr.f32.gmra.mrb[0].mxu0 %v418
    %v486 = vpop.f32.mrb[0].mxu0
    %v487 = vadd.f32 %v413, %v486
    %v488 = vpop.f32.mrb[0].mxu0
    %489 = vdwg.mxu0
    %490 = vst [vmem:[#allocation13] sm:$0xff] %v487
    %v492 = vsel %vm225, %v417, %v397
    %vm493 = vcmask 523264
    %494 = vst.msk [vmem:[%s129] sm:$0xff] %vm493, %v492
    %s495 = sld [smem:[#allocation3]]
    %p496 = scmp.lt.s32.totalorder %s495, 2
    %s497 = scalar_select %p496, %s495, 2
    %s498 = smul.addr %s497, 8
    %s499 = scalar_lea.vmem %s11, %s498
    // Predicated region
    $region58: #{dilated_lstm_agent_forward.1} parent=1 // pred_check
      _
    $region59: #{dilated_lstm_agent_forward.1} parent=1 // pred_check_branch
      %501 = sbr.rel (0) target = $region61
    $region60: #{dilated_lstm_agent_forward.1} parent=1 // pred_region
      %s503 = ssub.s32 128, 128
      %504 = vsyncadd [#allocation6], %s503
      %s506 = sshll.u32 [#allocation13], 4
      %s507 = int_to_ptr.vmem [resolvable:$true] %s506
      %509 = dma.vmem_to_hbm [thread:$0]  %s507, 128, %s10, [#allocation6]
    $region61: #{dilated_lstm_agent_forward.1} parent=1 // pred_fallthru
      _
    // Predicated region
    $region62: #{dilated_lstm_agent_forward.1} parent=1 // pred_check
      _
    $region63: #{dilated_lstm_agent_forward.1} parent=1 // pred_check_branch
      %511 = sbr.rel (0) target = $region65
    $region64: #{dilated_lstm_agent_forward.1} parent=1 // pred_region
      %s512 = sld [smem:[#allocation3]]
    $region65: #{dilated_lstm_agent_forward.1} parent=1 // pred_fallthru
      _
    // Predicated region
    $region66: #{dilated_lstm_agent_forward.1} parent=1 // pred_check
      _
    $region67: #{dilated_lstm_agent_forward.1} parent=1 // pred_check_branch
      %514 = sbr.rel (0) target = $region69
    $region68: #{dilated_lstm_agent_forward.1} parent=1 // pred_region
      %515 = dma.done [#allocation6], 128
    $region69: #{dilated_lstm_agent_forward.1} parent=1 // pred_fallthru
      _
    // Predicated region
    $region70: #{dilated_lstm_agent_forward.1} parent=1 // pred_check
      _
    $region71: #{dilated_lstm_agent_forward.1} parent=1 // pred_check_branch
      %517 = sbr.rel (0) target = $region73
    $region72: #{dilated_lstm_agent_forward.1} parent=1 // pred_region
      %s518 = sld [smem:[#allocation3]]
      %p519 = scmp.lt.s32.totalorder %s518, 2
      %s520 = scalar_select %p519, %s518, 2
      %s521 = smul.addr %s520, 8
      %s522 = scalar_lea.vmem %s11, %s521
    $region73: #{dilated_lstm_agent_forward.1} parent=1 // pred_fallthru
      _
    %523 = vsyncpa [#allocation5], 1
    %524 = vsyncpa [#allocation8], 1
    %525 = vsyncpa [#allocation11], 1
    %526 = vsyncpa [#allocation6], 1

</llo_original>
